<compile_context>
chip_gen: v7x
topology: tpu7x:2x2x1
jax: 0.10.0
libtpu: 0.0.40
codegen_flags: <defaults>
</compile_context>

<pallas_src>
import functools

import jax
import jax.numpy as jnp
from jax.experimental import pallas as pl
from jax.experimental.pallas import tpu as pltpu


def _mlp_kernel(n_layers, use_bf16, z_ref, *refs):
    """Fused MLP forward for one batch tile (batch on the lane axis).

    z_ref:  (d_in, tile_m)   input tile
    refs = (w0, b0, w1, b1, ..., w_{L-1}, b_{L-1}, out_ref)
      w_i: (out_i, in_i)  (PyTorch layout), b_i: (out_i, 1)
    Hidden layers use tanh; final layer uses softplus; then + 0.001.
    """
    out_ref = refs[-1]
    param_refs = refs[:-1]

    h = z_ref[...].astype(jnp.float32)                         # (in_0, T)

    for li in range(n_layers):
        w = param_refs[2 * li][...].astype(jnp.float32)        # (out, in)
        b = param_refs[2 * li + 1][...].astype(jnp.float32)    # (out, 1)
        in_f = w.shape[1]

        if in_f <= 4:
            # Tiny contraction dim (e.g. d_in = 2): skip the MXU entirely and
            # do unrolled broadcasted FMAs on the VPU (outer products).
            hf = h.astype(jnp.float32)
            acc = b                                            # (out, 1) broadcasts
            for k in range(in_f):
                acc = acc + w[:, k:k + 1] * hf[k:k + 1, :]     # (out,1)*(1,T) -> (out,T)
            h = acc
        else:
            # Hidden / final layer on the MXU; bf16 inputs on bf16-capable
            # chips, always accumulating in f32.
            lhs = w.astype(jnp.bfloat16) if use_bf16 else w
            rhs = h.astype(jnp.bfloat16) if use_bf16 else h.astype(jnp.float32)
            h = jnp.dot(lhs, rhs, preferred_element_type=jnp.float32) + b

        if li < n_layers - 1:
            if use_bf16:
                # EUP-bound kernel: bf16 tanh halves EUP/VALU traffic (v6e/v7x).
                h = jnp.tanh(h.astype(jnp.bfloat16))
            else:
                h = jnp.tanh(h)
        else:
            # numerically-stable softplus in f32: max(x,0) + log1p(exp(-|x|))
            h = jnp.maximum(h, 0.0) + jnp.log1p(jnp.exp(-jnp.abs(h)))

    out_ref[...] = (h + 0.001).astype(out_ref.dtype)


def _tpu_config():
    """Chip-generation gating: (#TensorCores per chip, use bf16 activations)."""
    kind = ""
    try:
        kind = jax.devices()[0].device_kind.lower()
    except Exception:
        pass
    is_v7 = "v7" in kind
    is_v6 = "v6" in kind
    use_bf16 = is_v6 or is_v7          # bf16 EUP/VPU only on v6e / v7x
    num_tc = 2 if is_v7 else 1         # v7x has 2 TensorCores per chip
    return num_tc, use_bf16


def _pick_tile(N, tile_m, num_tc):
    """Batch tile in lanes: as large as requested, multiple of 128.

    On 2-TC chips (v7x) force an even number of >= 2 grid steps so both cores
    stay busy; on single-TC chips (v5e/v6e) never shrink the tile for that.
    """
    lanes = 128
    needed = pl.cdiv(N, lanes) * lanes
    tile = min(int(tile_m), needed)
    tile = max(lanes, (tile // lanes) * lanes)

    if num_tc >= 2 and needed > lanes:
        steps = pl.cdiv(N, tile)
        if steps < 2:
            steps = 2
        if steps % 2:
            steps += 1
        tile = max(lanes, pl.cdiv(pl.cdiv(N, steps), lanes) * lanes)
    return tile


def e_net_forward(z, weights, biases, *, tile_m=2048, use_bf16=None):
    """Run the E_Net forward pass with a fused Pallas kernel.

    z:        (N, d_in) float32 (PyTorch input convention)
    weights:  list of (out_i, in_i) float32 arrays (PyTorch nn.Linear layout)
    biases:   list of (out_i,) float32 arrays
    Returns:  (N, d_out) float32
    """
    n_layers = len(weights)
    N, d_in = z.shape
    d_out = weights[-1].shape[0]

    num_tc, auto_bf16 = _tpu_config()
    if use_bf16 is None:
        use_bf16 = auto_bf16

    # Batch onto the lane axis: z^T is (d_in, N). No explicit padding — Pallas
    # masks the ragged last block (per-lane independent, bounded ops).
    zt = z.astype(jnp.float32).T

    tile = _pick_tile(N, tile_m, num_tc)
    grid = (pl.cdiv(N, tile),)

    w32 = [w.astype(jnp.float32) for w in weights]
    b2d = [b.reshape(-1, 1).astype(jnp.float32) for b in biases]   # (out,1): broadcast over lanes

    # z is tiled along the batch/lane axis; every weight/bias is one full block.
    # (Constant index_map -> params stay resident in VMEM across grid steps.)
    in_specs = [pl.BlockSpec((d_in, tile), lambda i: (0, i))]
    for w, b in zip(w32, b2d):
        in_specs.append(pl.BlockSpec(w.shape, lambda i: (0, 0)))
        in_specs.append(pl.BlockSpec(b.shape, lambda i: (0, 0)))

    # Lane-dense output block: (d_out, tile) with the batch on the lane axis.
    out_spec = pl.BlockSpec((d_out, tile), lambda i: (0, i))

    # Advisory cost estimate so XLA schedules the custom call sensibly.
    flops = 2 * N * sum(int(w.shape[0] * w.shape[1]) for w in w32) \
        + N * sum(int(b.size) for b in b2d)
    transcendentals = N * (sum(int(w.shape[0]) for w in w32[:-1]) + 2 * d_out)
    bytes_accessed = 4 * (N * (d_in + d_out)
                          + sum(int(w.size) for w in w32)
                          + sum(int(b.size) for b in b2d))

    kernel = functools.partial(_mlp_kernel, n_layers, bool(use_bf16))

    flat_params = []
    for w, b in zip(w32, b2d):
        flat_params.extend([w, b])

    out_t = pl.pallas_call(
        kernel,
        out_shape=jax.ShapeDtypeStruct((d_out, N), jnp.float32),
        grid_spec=pltpu.PrefetchScalarGridSpec(
            num_scalar_prefetch=0,
            grid=grid,
            in_specs=in_specs,
            out_specs=out_spec,
        ),
        compiler_params=pltpu.CompilerParams(
            dimension_semantics=("parallel",),
        ),
        cost_estimate=pl.CostEstimate(
            flops=int(flops),
            transcendentals=int(transcendentals),
            bytes_accessed=int(bytes_accessed),
        ),
    )(zt, *flat_params)

    # Return in PyTorch (N, d_out) layout.
    return out_t.T


def init_e_net_params(layers, key):
    """Deterministic init mimicking PyTorch nn.Linear defaults:
    U(-1/sqrt(fan_in), 1/sqrt(fan_in)) for both weight and bias.
    Weights stored in PyTorch (out, in) layout.
    """
    weights, biases = [], []
    for i in range(len(layers) - 1):
        fan_in, fan_out = layers[i], layers[i + 1]
        key, kw, kb = jax.random.split(key, 3)
        bound = 1.0 / jnp.sqrt(jnp.float32(fan_in))
        w = jax.random.uniform(kw, (fan_out, fan_in), jnp.float32, -bound, bound)
        b = jax.random.uniform(kb, (fan_out,), jnp.float32, -bound, bound)
        weights.append(w)
        biases.append(b)
    return weights, biases


def e_net_reference(z, weights, biases):
    """Pure-JAX reference of the PyTorch forward pass."""
    h = z
    n = len(weights)
    for i, (w, b) in enumerate(zip(weights, biases)):
        h = h @ w.T + b
        if i < n - 1:
            h = jnp.tanh(h)
        else:
            h = jax.nn.softplus(h)
    return h + 0.001


if __name__ == "__main__":
    key = jax.random.PRNGKey(0)

    # E_Net(layers=[2, 32, 32, 1]) — typical PINN sizing, kept small.
    layers = [2, 32, 32, 1]
    N = 300  # non-multiple of 128: exercises the ragged last-block path

    key, kz = jax.random.split(key)
    z = jax.random.normal(kz, (N, layers[0]), dtype=jnp.float32)

    weights, biases = init_e_net_params(layers, key)

    _, bf16_path = _tpu_config()

    out = e_net_forward(z, weights, biases)
    out = jax.block_until_ready(out)

    ref = e_net_reference(z, weights, biases)
    assert out.shape == (N, layers[-1])

    if bf16_path:
        # bf16 hidden activations (v6e/v7x): relax tolerance vs f32 reference.
        ok = jnp.allclose(out, ref, atol=5e-2, rtol=5e-2)
    else:
        ok = jnp.allclose(out, ref, atol=2e-5, rtol=1e-4)
    assert ok, "mismatch vs reference"

    print("KERNEL_OK")
</pallas_src>

<mosaic_0001>
module attributes {stable_mosaic.version = 11 : i64} {
  func.func @_mlp_kernel(%arg0: i32, %arg1: memref<2x384xf32, #tpu.memory_space<vmem>>, %arg2: memref<32x2xf32, #tpu.memory_space<vmem>>, %arg3: memref<32x1xf32, #tpu.memory_space<vmem>>, %arg4: memref<32x32xf32, #tpu.memory_space<vmem>>, %arg5: memref<32x1xf32, #tpu.memory_space<vmem>>, %arg6: memref<1x32xf32, #tpu.memory_space<vmem>>, %arg7: memref<1x1xf32, #tpu.memory_space<vmem>>, %arg8: memref<1x384xf32, #tpu.memory_space<vmem>>) attributes {dimension_semantics = [#tpu.dimension_semantics<parallel>], iteration_bounds = array<i64: 1>, scalar_prefetch = 0 : i64, scratch_operands = 0 : i64, tpu.core_type = #tpu.core_type<tc>, window_params = [{transform_indices = @transform_0, window_bounds = array<i64: 2, 384>}, {pipeline_mode = #tpu.pipeline_mode<synchronous>, transform_indices = @transform_1, window_bounds = array<i64: 32, 2>}, {pipeline_mode = #tpu.pipeline_mode<synchronous>, transform_indices = @transform_2, window_bounds = array<i64: 32, 1>}, {pipeline_mode = #tpu.pipeline_mode<synchronous>, transform_indices = @transform_3, window_bounds = array<i64: 32, 32>}, {pipeline_mode = #tpu.pipeline_mode<synchronous>, transform_indices = @transform_4, window_bounds = array<i64: 32, 1>}, {pipeline_mode = #tpu.pipeline_mode<synchronous>, transform_indices = @transform_5, window_bounds = array<i64: 1, 32>}, {pipeline_mode = #tpu.pipeline_mode<synchronous>, transform_indices = @transform_6, window_bounds = array<i64: 1, 1>}, {transform_indices = @transform_7, window_bounds = array<i64: 1, 384>}]} {
    %c0 = arith.constant 0 : index
    %c0_0 = arith.constant 0 : index
    %0 = vector.load %arg1[%c0, %c0_0] : memref<2x384xf32, #tpu.memory_space<vmem>>, vector<2x384xf32>
    %c0_1 = arith.constant 0 : index
    %c0_2 = arith.constant 0 : index
    %1 = vector.load %arg2[%c0_1, %c0_2] : memref<32x2xf32, #tpu.memory_space<vmem>>, vector<32x2xf32>
    %c0_3 = arith.constant 0 : index
    %c0_4 = arith.constant 0 : index
    %2 = vector.load %arg3[%c0_3, %c0_4] : memref<32x1xf32, #tpu.memory_space<vmem>>, vector<32x1xf32>
    %3 = vector.extract_strided_slice %1 {offsets = [0, 0], sizes = [32, 1], strides = [1, 1]} : vector<32x2xf32> to vector<32x1xf32>
    %4 = vector.extract_strided_slice %0 {offsets = [0, 0], sizes = [1, 384], strides = [1, 1]} : vector<2x384xf32> to vector<1x384xf32>
    %5 = vector.broadcast %3 : vector<32x1xf32> to vector<32x384xf32>
    %6 = vector.broadcast %4 : vector<1x384xf32> to vector<32x384xf32>
    %7 = arith.mulf %5, %6 : vector<32x384xf32>
    %8 = vector.broadcast %2 : vector<32x1xf32> to vector<32x384xf32>
    %9 = arith.addf %8, %7 : vector<32x384xf32>
    %10 = vector.extract_strided_slice %1 {offsets = [0, 1], sizes = [32, 1], strides = [1, 1]} : vector<32x2xf32> to vector<32x1xf32>
    %11 = vector.extract_strided_slice %0 {offsets = [1, 0], sizes = [1, 384], strides = [1, 1]} : vector<2x384xf32> to vector<1x384xf32>
    %12 = vector.broadcast %10 : vector<32x1xf32> to vector<32x384xf32>
    %13 = vector.broadcast %11 : vector<1x384xf32> to vector<32x384xf32>
    %14 = arith.mulf %12, %13 : vector<32x384xf32>
    %15 = arith.addf %9, %14 : vector<32x384xf32>
    %16 = math.tanh %15 : vector<32x384xf32>
    %c0_5 = arith.constant 0 : index
    %c0_6 = arith.constant 0 : index
    %17 = vector.load %arg4[%c0_5, %c0_6] : memref<32x32xf32, #tpu.memory_space<vmem>>, vector<32x32xf32>
    %c0_7 = arith.constant 0 : index
    %c0_8 = arith.constant 0 : index
    %18 = vector.load %arg5[%c0_7, %c0_8] : memref<32x1xf32, #tpu.memory_space<vmem>>, vector<32x1xf32>
    %cst = arith.constant dense<0.000000e+00> : vector<32x384xf32>
    %19 = tpu.matmul %17, %16, %cst {dimension_numbers = #tpu.dot_dimension_numbers<[1], [0], [0], [1], [0, 0, 1, 1], [], []>} : vector<32x32xf32>, vector<32x384xf32>, vector<32x384xf32> -> vector<32x384xf32>
    %20 = vector.broadcast %18 : vector<32x1xf32> to vector<32x384xf32>
    %21 = arith.addf %19, %20 : vector<32x384xf32>
    %22 = math.tanh %21 : vector<32x384xf32>
    %c0_9 = arith.constant 0 : index
    %c0_10 = arith.constant 0 : index
    %23 = vector.load %arg6[%c0_9, %c0_10] : memref<1x32xf32, #tpu.memory_space<vmem>>, vector<1x32xf32>
    %c0_11 = arith.constant 0 : index
    %c0_12 = arith.constant 0 : index
    %24 = vector.load %arg7[%c0_11, %c0_12] : memref<1x1xf32, #tpu.memory_space<vmem>>, vector<1x1xf32>
    %cst_13 = arith.constant dense<0.000000e+00> : vector<1x384xf32>
    %25 = tpu.matmul %23, %22, %cst_13 {dimension_numbers = #tpu.dot_dimension_numbers<[1], [0], [0], [1], [0, 0, 1, 1], [], []>} : vector<1x32xf32>, vector<32x384xf32>, vector<1x384xf32> -> vector<1x384xf32>
    %26 = vector.broadcast %24 : vector<1x1xf32> to vector<1x384xf32>
    %27 = arith.addf %25, %26 : vector<1x384xf32>
    %cst_14 = arith.constant 0.000000e+00 : f32
    %28 = vector.broadcast %cst_14 : f32 to vector<1x384xf32>
    %29 = arith.maximumf %27, %28 : vector<1x384xf32>
    %30 = math.absf %27 : vector<1x384xf32>
    %cst_15 = arith.constant 0.000000e+00 : f32
    %31 = vector.broadcast %cst_15 : f32 to vector<1x384xf32>
    %32 = arith.subf %31, %30 : vector<1x384xf32>
    %33 = math.exp %32 : vector<1x384xf32>
    %34 = math.log1p %33 : vector<1x384xf32>
    %35 = arith.addf %29, %34 : vector<1x384xf32>
    %cst_16 = arith.constant 1.000000e-03 : f32
    %36 = vector.broadcast %cst_16 : f32 to vector<1x384xf32>
    %37 = arith.addf %35, %36 : vector<1x384xf32>
    %c0_17 = arith.constant 0 : index
    %c0_18 = arith.constant 0 : index
    %38 = vector.load %arg8[%c0_17, %c0_18] : memref<1x384xf32, #tpu.memory_space<vmem>>, vector<1x384xf32>
    tpu.vector_store %arg8[%c0_17, %c0_18], %37 {strides = array<i32>} : memref<1x384xf32, #tpu.memory_space<vmem>>, vector<1x384xf32>,
    return
  }
  func.func @transform_0(%arg0: i32) -> (i32, i32) {
    %c0_i32 = arith.constant 0 : i32
    %c0_i32_0 = arith.constant 0 : i32
    return %c0_i32, %arg0 : i32, i32
  }
  func.func @transform_1(%arg0: i32) -> (i32, i32) {
    %c0_i32 = arith.constant 0 : i32
    %c0_i32_0 = arith.constant 0 : i32
    %c0_i32_1 = arith.constant 0 : i32
    return %c0_i32, %c0_i32_0 : i32, i32
  }
  func.func @transform_2(%arg0: i32) -> (i32, i32) {
    %c0_i32 = arith.constant 0 : i32
    %c0_i32_0 = arith.constant 0 : i32
    %c0_i32_1 = arith.constant 0 : i32
    return %c0_i32, %c0_i32_0 : i32, i32
  }
  func.func @transform_3(%arg0: i32) -> (i32, i32) {
    %c0_i32 = arith.constant 0 : i32
    %c0_i32_0 = arith.constant 0 : i32
    %c0_i32_1 = arith.constant 0 : i32
    return %c0_i32, %c0_i32_0 : i32, i32
  }
  func.func @transform_4(%arg0: i32) -> (i32, i32) {
    %c0_i32 = arith.constant 0 : i32
    %c0_i32_0 = arith.constant 0 : i32
    %c0_i32_1 = arith.constant 0 : i32
    return %c0_i32, %c0_i32_0 : i32, i32
  }
  func.func @transform_5(%arg0: i32) -> (i32, i32) {
    %c0_i32 = arith.constant 0 : i32
    %c0_i32_0 = arith.constant 0 : i32
    %c0_i32_1 = arith.constant 0 : i32
    return %c0_i32, %c0_i32_0 : i32, i32
  }
  func.func @transform_6(%arg0: i32) -> (i32, i32) {
    %c0_i32 = arith.constant 0 : i32
    %c0_i32_0 = arith.constant 0 : i32
    %c0_i32_1 = arith.constant 0 : i32
    return %c0_i32, %c0_i32_0 : i32, i32
  }
  func.func @transform_7(%arg0: i32) -> (i32, i32) {
    %c0_i32 = arith.constant 0 : i32
    %c0_i32_0 = arith.constant 0 : i32
    return %c0_i32, %arg0 : i32, i32
  }
}

</mosaic_0001>

<llo_original>
// kernel: tpu_custom_call.1
$region0: #{tpu_custom_call.1}
  #allocation0 [shape = 'u32[]', space=smem, size = 0x4, offset = 0x4, fixed_abs, tag = 'smem constant byte address 0x4 - core index']
  #allocation1 [shape = 'u32[144,128]{1,0:T(1,128)}', space=vmem, size = 0x12000, scoped, tag = 'internal scratch']
  #allocation2 [shape = 'f32[1,1]{1,0:T(1,128)S(1)}', space=vmem, size = 0x200, scoped, tag = 'scoped memory for tpu_custom_call.1']
  %s0 = inlined_call_operand.vmem [shape: f32[2,300], index: 0, kind: input, shape index: {}]
  %s1 = inlined_call_operand.vmem [shape: f32[32,2], index: 1, kind: input, shape index: {}]
  %s2 = inlined_call_operand.vmem [shape: f32[32,1], index: 2, kind: input, shape index: {}]
  %s3 = inlined_call_operand.vmem [shape: f32[32,32], index: 3, kind: input, shape index: {}]
  %s4 = inlined_call_operand.vmem [shape: f32[32,1], index: 4, kind: input, shape index: {}]
  %s5 = inlined_call_operand.vmem [shape: f32[1,32], index: 5, kind: input, shape index: {}]
  %s6 = inlined_call_operand.<no memory space> [shape: f32[1,1], index: 6, kind: input, shape index: {}]
  %s7 = inlined_call_operand.hbm [shape: f32[1,300], index: 7, kind: output, shape index: {}]
  %s8 = sld [smem:[#allocation0]]
  $region38: #{tpu_custom_call.1} parent=0
    _
  %s10 = ssub.s32 1, %s8
  %s11 = scalar_select 0, %s10, %s8
  %v12 = vstv %s6
  %13 = vst [vmem:[#allocation2] sm:$0x1] %v12
  $region1: #{tpu_custom_call.1} parent=0
    #allocation3 [shape = 'u8[1536]{0}', space=vmem, size = 0x800, scoped, tag = 'output window, operand 0, single buffered']
    #allocation4 [shape = 's32[1]{0}', space=sflag, size = 0x4, scoped, tag = 'scoped memory for tpu_custom_call.1']
    %14 = vsyncpa [#allocation4], 0
    // Predicated region
    $region2: #{tpu_custom_call.1} parent=1 // pred_check
      _
    $region3: #{tpu_custom_call.1} parent=1 // pred_check_branch
      %16 = sbr.rel (0) target = $region5
    $region4: #{tpu_custom_call.1} parent=1 // pred_region
      _
    $region5: #{tpu_custom_call.1} parent=1 // pred_fallthru
      _
    // Predicated region
    $region6: #{tpu_custom_call.1} parent=1 // pred_check
      _
    $region7: #{tpu_custom_call.1} parent=1 // pred_check_branch
      %18 = sbr.rel (0) target = $region9
    $region8: #{tpu_custom_call.1} parent=1 // pred_region
      _
    $region9: #{tpu_custom_call.1} parent=1 // pred_fallthru
      _
    // Predicated region
    $region10: #{tpu_custom_call.1} parent=1 // pred_check
      _
    $region11: #{tpu_custom_call.1} parent=1 // pred_check_branch
      %20 = sbr.rel (0) target = $region13
    $region12: #{tpu_custom_call.1} parent=1 // pred_region
      _
    $region13: #{tpu_custom_call.1} parent=1 // pred_fallthru
      _
    // Predicated region
    $region14: #{tpu_custom_call.1} parent=1 // pred_check
      _
    $region15: #{tpu_custom_call.1} parent=1 // pred_check_branch
      %22 = sbr.rel (0) target = $region17
    $region16: #{tpu_custom_call.1} parent=1 // pred_region
      _
    $region17: #{tpu_custom_call.1} parent=1 // pred_fallthru
      _
    // Predicated region
    $region18: #{tpu_custom_call.1} parent=1 // pred_check
      _
    $region19: #{tpu_custom_call.1} parent=1 // pred_check_branch
      %24 = sbr.rel (0) target = $region21
    $region20: #{tpu_custom_call.1} parent=1 // pred_region
      _
    $region21: #{tpu_custom_call.1} parent=1 // pred_fallthru
      _
    // Predicated region
    $region22: #{tpu_custom_call.1} parent=1 // pred_check
      _
    $region23: #{tpu_custom_call.1} parent=1 // pred_check_branch
      %26 = sbr.rel (0) target = $region25
    $region24: #{tpu_custom_call.1} parent=1 // pred_region
      _
    $region25: #{tpu_custom_call.1} parent=1 // pred_fallthru
      _
    // Predicated region
    $region26: #{tpu_custom_call.1} parent=1 // pred_check
      _
    $region27: #{tpu_custom_call.1} parent=1 // pred_check_branch
      %28 = sbr.rel (0) target = $region29
    $region28: #{tpu_custom_call.1} parent=1 // pred_region
      _
    $region29: #{tpu_custom_call.1} parent=1 // pred_fallthru
      _
    %v29 = vld [vmem:[%s0] sm:$0x3f]
    %v30 = vld [vmem:[%s1] sm:$0xff]
    %v31 = vld [vmem:[%s1 + $0x8] sm:$0xff]
    %v32 = vld [vmem:[%s1 + $0x10] sm:$0xff]
    %v33 = vld [vmem:[%s1 + $0x18] sm:$0xff]
    %v34 = vld [vmem:[%s2] sm:$0xff]
    %v35 = vld [vmem:[%s2 + $0x8] sm:$0xff]
    %v36 = vld [vmem:[%s2 + $0x10] sm:$0xff]
    %v37 = vld [vmem:[%s2 + $0x18] sm:$0xff]
    %39 = vset.pattern.permute.xlu0 0
    %40 = vperm.xlu0 %39, %v30
    %v41 = vpop.permute.xlu0 %40
    %44 = vset.pattern.permute.xlu0 0
    %45 = vperm.xlu0 %44, %v31
    %v46 = vpop.permute.xlu0 %45
    %49 = vset.pattern.permute.xlu0 0
    %50 = vperm.xlu0 %49, %v32
    %v51 = vpop.permute.xlu0 %50
    %54 = vset.pattern.permute.xlu0 0
    %55 = vperm.xlu0 %54, %v33
    %v56 = vpop.permute.xlu0 %55
    %v59 = vlaneseq
    %v60 = vshrl.u32 %v59, 7
    %v61 = vsub.s32 0, %v60
    %v62 = vrot.slane %v29, %v61
    %v63 = vlaneseq
    %v64 = vshrl.u32 %v63, 7
    %v65 = vsub.s32 2, %v64
    %v66 = vrot.slane %v29, %v65
    %v67 = vlaneseq
    %v68 = vshrl.u32 %v67, 7
    %v69 = vsub.s32 4, %v68
    %v70 = vrot.slane %v29, %v69
    %v74 = vlaneseq
    %v75 = vshrl.u32 %v74, 7
    %v76 = vsub.s32 0, %v75
    %v77 = vrot.slane %v62, %v76
    %v78 = vlaneseq
    %v79 = vshrl.u32 %v78, 7
    %v80 = vsub.s32 0, %v79
    %v81 = vrot.slane %v66, %v80
    %v82 = vlaneseq
    %v83 = vshrl.u32 %v82, 7
    %v84 = vsub.s32 0, %v83
    %v85 = vrot.slane %v70, %v84
    %v86 = vmul.f32 %v41, %v77
    %v87 = vmul.f32 %v41, %v81
    %v88 = vmul.f32 %v41, %v85
    %v89 = vmul.f32 %v46, %v77
    %v90 = vmul.f32 %v46, %v81
    %v91 = vmul.f32 %v46, %v85
    %v92 = vmul.f32 %v51, %v77
    %v93 = vmul.f32 %v51, %v81
    %v94 = vmul.f32 %v51, %v85
    %v95 = vmul.f32 %v56, %v77
    %v96 = vmul.f32 %v56, %v81
    %v97 = vmul.f32 %v56, %v85
    %99 = vset.pattern.permute.xlu0 0
    %100 = vperm.xlu0 %99, %v34
    %v101 = vpop.permute.xlu0 %100
    %104 = vset.pattern.permute.xlu0 0
    %105 = vperm.xlu0 %104, %v35
    %v106 = vpop.permute.xlu0 %105
    %109 = vset.pattern.permute.xlu0 0
    %110 = vperm.xlu0 %109, %v36
    %v111 = vpop.permute.xlu0 %110
    %114 = vset.pattern.permute.xlu0 0
    %115 = vperm.xlu0 %114, %v37
    %v116 = vpop.permute.xlu0 %115
    %v118 = vadd.f32 %v101, %v86
    %v119 = vadd.f32 %v101, %v87
    %v120 = vadd.f32 %v101, %v88
    %v121 = vadd.f32 %v106, %v89
    %v122 = vadd.f32 %v106, %v90
    %v123 = vadd.f32 %v106, %v91
    %v124 = vadd.f32 %v111, %v92
    %v125 = vadd.f32 %v111, %v93
    %v126 = vadd.f32 %v111, %v94
    %v127 = vadd.f32 %v116, %v95
    %v128 = vadd.f32 %v116, %v96
    %v129 = vadd.f32 %v116, %v97
    %130 = vset.pattern.permute.xlu0 1
    %131 = vperm.xlu0 %130, %v30
    %v132 = vpop.permute.xlu0 %131
    %134 = vset.pattern.permute.xlu0 1
    %135 = vperm.xlu0 %134, %v31
    %v136 = vpop.permute.xlu0 %135
    %138 = vset.pattern.permute.xlu0 1
    %139 = vperm.xlu0 %138, %v32
    %v140 = vpop.permute.xlu0 %139
    %142 = vset.pattern.permute.xlu0 1
    %143 = vperm.xlu0 %142, %v33
    %v144 = vpop.permute.xlu0 %143
    %v146 = vlaneseq
    %v147 = vshrl.u32 %v146, 7
    %v148 = vsub.s32 1, %v147
    %v149 = vrot.slane %v29, %v148
    %v150 = vlaneseq
    %v151 = vshrl.u32 %v150, 7
    %v152 = vsub.s32 3, %v151
    %v153 = vrot.slane %v29, %v152
    %v154 = vlaneseq
    %v155 = vshrl.u32 %v154, 7
    %v156 = vsub.s32 5, %v155
    %v157 = vrot.slane %v29, %v156
    %v161 = vlaneseq
    %v162 = vshrl.u32 %v161, 7
    %v163 = vsub.s32 1, %v162
    %v164 = vrot.slane %v149, %v163
    %v165 = vlaneseq
    %v166 = vshrl.u32 %v165, 7
    %v167 = vsub.s32 1, %v166
    %v168 = vrot.slane %v153, %v167
    %v169 = vlaneseq
    %v170 = vshrl.u32 %v169, 7
    %v171 = vsub.s32 1, %v170
    %v172 = vrot.slane %v157, %v171
    %v173 = vmul.f32 %v132, %v164
    %v174 = vmul.f32 %v132, %v168
    %v175 = vmul.f32 %v132, %v172
    %v176 = vmul.f32 %v136, %v164
    %v177 = vmul.f32 %v136, %v168
    %v178 = vmul.f32 %v136, %v172
    %v179 = vmul.f32 %v140, %v164
    %v180 = vmul.f32 %v140, %v168
    %v181 = vmul.f32 %v140, %v172
    %v182 = vmul.f32 %v144, %v164
    %v183 = vmul.f32 %v144, %v168
    %v184 = vmul.f32 %v144, %v172
    %v185 = vadd.f32 %v118, %v173
    %v186 = vadd.f32 %v119, %v174
    %v187 = vadd.f32 %v120, %v175
    %v188 = vadd.f32 %v121, %v176
    %v189 = vadd.f32 %v122, %v177
    %v190 = vadd.f32 %v123, %v178
    %v191 = vadd.f32 %v124, %v179
    %v192 = vadd.f32 %v125, %v180
    %v193 = vadd.f32 %v126, %v181
    %v194 = vadd.f32 %v127, %v182
    %v195 = vadd.f32 %v128, %v183
    %v196 = vadd.f32 %v129, %v184
    %v197 = vtanh.pop %v185
    %v198 = vtanh.pop %v186
    %v199 = vtanh.pop %v187
    %v200 = vtanh.pop %v188
    %v201 = vtanh.pop %v189
    %v202 = vtanh.pop %v190
    %v203 = vtanh.pop %v191
    %v204 = vtanh.pop %v192
    %v205 = vtanh.pop %v193
    %v206 = vtanh.pop %v194
    %v207 = vtanh.pop %v195
    %v208 = vtanh.pop %v196
    %v209 = vld [vmem:[%s3] sm:$0xff]
    %v210 = vld [vmem:[%s3 + $0x8] sm:$0xff]
    %v211 = vld [vmem:[%s3 + $0x10] sm:$0xff]
    %v212 = vld [vmem:[%s3 + $0x18] sm:$0xff]
    %v213 = vld [vmem:[%s4] sm:$0xff]
    %v214 = vld [vmem:[%s4 + $0x8] sm:$0xff]
    %v215 = vld [vmem:[%s4 + $0x10] sm:$0xff]
    %v216 = vld [vmem:[%s4 + $0x18] sm:$0xff]
    %218 = vset.pattern.permute.xlu0 0
    %219 = vperm.xlu0 %218, %v213
    %v220 = vpop.permute.xlu0 %219
    %223 = vset.pattern.permute.xlu0 0
    %224 = vperm.xlu0 %223, %v214
    %v225 = vpop.permute.xlu0 %224
    %228 = vset.pattern.permute.xlu0 0
    %229 = vperm.xlu0 %228, %v215
    %v230 = vpop.permute.xlu0 %229
    %233 = vset.pattern.permute.xlu0 0
    %234 = vperm.xlu0 %233, %v216
    %v235 = vpop.permute.xlu0 %234
    %vm237 = vcmask 261120
    %v239 = vsel %vm237, %v209, 0
    %v242 = vsel %vm237, %v210, 0
    %v245 = vsel %vm237, %v211, 0
    %v248 = vsel %vm237, %v212, 0
    %250 = vmatprep.subr.mxu0 %v198
    %251 = vmatpush1.msra.mxu0 %v197
    %252 = vmatprep.subr.mxu0 %v201
    %253 = vmatpush1.msra.mxu0 %v200
    %254 = vmatprep.subr.mxu0 %v204
    %255 = vmatpush1.msra.mxu0 %v203
    %256 = vmatprep.subr.mxu0 %v207
    %257 = vmatpush1.msra.mxu0 %v206
    %258 = vmatprep.subr.mxu0 0.0
    %259 = vmatpush1.msra.mxu0 0.0
    %260 = vmatprep.subr.mxu0 0.0
    %261 = vmatpush1.msra.mxu0 0.0
    %262 = vmatprep.subr.mxu0 0.0
    %263 = vmatpush1.msra.mxu0 0.0
    %264 = vmatprep.subr.mxu0 0.0
    %265 = vmatpush1.msra.mxu0 0.0
    %266 = vmatprep.subr.mxu0 0.0
    %267 = vmatpush1.msra.mxu0 0.0
    %268 = vmatprep.subr.mxu0 0.0
    %269 = vmatpush1.msra.mxu0 0.0
    %270 = vmatprep.subr.mxu0 0.0
    %271 = vmatpush1.msra.mxu0 0.0
    %272 = vmatprep.subr.mxu0 0.0
    %273 = vmatpush1.msra.mxu0 0.0
    %274 = vmatprep.subr.mxu0 0.0
    %275 = vmatpush1.msra.mxu0 0.0
    %276 = vmatprep.subr.mxu0 0.0
    %277 = vmatpush1.msra.mxu0 0.0
    %278 = vmatprep.subr.mxu0 0.0
    %279 = vmatpush1.msra.mxu0 0.0
    %280 = vmatprep.subr.mxu0 0.0
    %281 = vmatpush1.msra.mxu0 0.0
    %282 = vmatprep.subr.mxu0 0.0
    %283 = vmatpush1.msra.mxu0 0.0
    %284 = vmatprep.subr.mxu0 0.0
    %285 = vmatpush1.msra.mxu0 0.0
    %286 = vmatprep.subr.mxu0 0.0
    %287 = vmatpush1.msra.mxu0 0.0
    %288 = vmatprep.subr.mxu0 0.0
    %289 = vmatpush1.msra.mxu0 0.0
    %290 = vmatprep.subr.mxu0 0.0
    %291 = vmatpush1.msra.mxu0 0.0
    %292 = vmatprep.subr.mxu0 0.0
    %293 = vmatpush1.msra.mxu0 0.0
    %294 = vmatprep.subr.mxu0 0.0
    %295 = vmatpush1.msra.mxu0 0.0
    %296 = vmatprep.subr.mxu0 0.0
    %297 = vmatpush1.msra.mxu0 0.0
    %298 = vmatprep.subr.mxu0 0.0
    %299 = vmatpush1.msra.mxu0 0.0
    %300 = vmatprep.subr.mxu0 0.0
    %301 = vmatpush1.msra.mxu0 0.0
    %302 = vmatprep.subr.mxu0 0.0
    %303 = vmatpush1.msra.mxu0 0.0
    %304 = vmatprep.subr.mxu0 0.0
    %305 = vmatpush1.msra.mxu0 0.0
    %306 = vmatprep.subr.mxu0 0.0
    %307 = vmatpush1.msra.mxu0 0.0
    %308 = vmatprep.subr.mxu0 0.0
    %309 = vmatpush1.msra.mxu0 0.0
    %310 = vmatprep.subr.mxu0 0.0
    %311 = vmatpush1.msra.mxu0 0.0
    %312 = vmatprep.subr.mxu0 0.0
    %313 = vmatpush1.msra.mxu0 0.0
    %314 = vmatprep.mubr.f32.mxu0 0.0
    %315 = vmatmul.mubr.f32.gmra.mrb[0].mxu0 %v239
    %v316 = vpop.f32.mrb[0].mxu0
    %v317 = vadd.f32 %v220, %v316
    %v318 = vpop.f32.mrb[0].mxu0
    %v319 = vadd.f32 %v220, %v318
    %320 = vmatprep.mubr.f32.mxu0 0.0
    %321 = vmatmul.mubr.f32.gmra.mrb[0].mxu0 %v242
    %v322 = vpop.f32.mrb[0].mxu0
    %v323 = vadd.f32 %v225, %v322
    %v324 = vpop.f32.mrb[0].mxu0
    %v325 = vadd.f32 %v225, %v324
    %326 = vmatprep.mubr.f32.mxu0 0.0
    %327 = vmatmul.mubr.f32.gmra.mrb[0].mxu0 %v245
    %v328 = vpop.f32.mrb[0].mxu0
    %v329 = vadd.f32 %v230, %v328
    %v330 = vpop.f32.mrb[0].mxu0
    %v331 = vadd.f32 %v230, %v330
    %332 = vmatprep.mubr.f32.mxu0 0.0
    %333 = vmatmul.mubr.f32.gmra.mrb[0].mxu0 %v248
    %v334 = vpop.f32.mrb[0].mxu0
    %v335 = vadd.f32 %v235, %v334
    %v336 = vpop.f32.mrb[0].mxu0
    %v337 = vadd.f32 %v235, %v336
    %338 = vdwg.mxu0
    %339 = vmatprep.subr.mxu0 0.0
    %340 = vmatpush1.msra.mxu0 %v199
    %341 = vmatprep.subr.mxu0 0.0
    %342 = vmatpush1.msra.mxu0 %v202
    %343 = vmatprep.subr.mxu0 0.0
    %344 = vmatpush1.msra.mxu0 %v205
    %345 = vmatprep.subr.mxu0 0.0
    %346 = vmatpush1.msra.mxu0 %v208
    %347 = vmatprep.subr.mxu0 0.0
    %348 = vmatpush1.msra.mxu0 0.0
    %349 = vmatprep.subr.mxu0 0.0
    %350 = vmatpush1.msra.mxu0 0.0
    %351 = vmatprep.subr.mxu0 0.0
    %352 = vmatpush1.msra.mxu0 0.0
    %353 = vmatprep.subr.mxu0 0.0
    %354 = vmatpush1.msra.mxu0 0.0
    %355 = vmatprep.subr.mxu0 0.0
    %356 = vmatpush1.msra.mxu0 0.0
    %357 = vmatprep.subr.mxu0 0.0
    %358 = vmatpush1.msra.mxu0 0.0
    %359 = vmatprep.subr.mxu0 0.0
    %360 = vmatpush1.msra.mxu0 0.0
    %361 = vmatprep.subr.mxu0 0.0
    %362 = vmatpush1.msra.mxu0 0.0
    %363 = vmatprep.subr.mxu0 0.0
    %364 = vmatpush1.msra.mxu0 0.0
    %365 = vmatprep.subr.mxu0 0.0
    %366 = vmatpush1.msra.mxu0 0.0
    %367 = vmatprep.subr.mxu0 0.0
    %368 = vmatpush1.msra.mxu0 0.0
    %369 = vmatprep.subr.mxu0 0.0
    %370 = vmatpush1.msra.mxu0 0.0
    %371 = vmatprep.subr.mxu0 0.0
    %372 = vmatpush1.msra.mxu0 0.0
    %373 = vmatprep.subr.mxu0 0.0
    %374 = vmatpush1.msra.mxu0 0.0
    %375 = vmatprep.subr.mxu0 0.0
    %376 = vmatpush1.msra.mxu0 0.0
    %377 = vmatprep.subr.mxu0 0.0
    %378 = vmatpush1.msra.mxu0 0.0
    %379 = vmatprep.subr.mxu0 0.0
    %380 = vmatpush1.msra.mxu0 0.0
    %381 = vmatprep.subr.mxu0 0.0
    %382 = vmatpush1.msra.mxu0 0.0
    %383 = vmatprep.subr.mxu0 0.0
    %384 = vmatpush1.msra.mxu0 0.0
    %385 = vmatprep.subr.mxu0 0.0
    %386 = vmatpush1.msra.mxu0 0.0
    %387 = vmatprep.subr.mxu0 0.0
    %388 = vmatpush1.msra.mxu0 0.0
    %389 = vmatprep.subr.mxu0 0.0
    %390 = vmatpush1.msra.mxu0 0.0
    %391 = vmatprep.subr.mxu0 0.0
    %392 = vmatpush1.msra.mxu0 0.0
    %393 = vmatprep.subr.mxu0 0.0
    %394 = vmatpush1.msra.mxu0 0.0
    %395 = vmatprep.subr.mxu0 0.0
    %396 = vmatpush1.msra.mxu0 0.0
    %397 = vmatprep.subr.mxu0 0.0
    %398 = vmatpush1.msra.mxu0 0.0
    %399 = vmatprep.subr.mxu0 0.0
    %400 = vmatpush1.msra.mxu0 0.0
    %401 = vmatprep.subr.mxu0 0.0
    %402 = vmatpush1.msra.mxu0 0.0
    %403 = vmatprep.mubr.f32.mxu0 0.0
    %404 = vmatmul.mubr.f32.gmra.mrb[0].mxu0 %v239
    %v405 = vpop.f32.mrb[0].mxu0
    %v406 = vadd.f32 %v220, %v405
    %v407 = vpop.f32.mrb[0].mxu0
    %408 = vmatprep.mubr.f32.mxu0 0.0
    %409 = vmatmul.mubr.f32.gmra.mrb[0].mxu0 %v242
    %v410 = vpop.f32.mrb[0].mxu0
    %v411 = vadd.f32 %v225, %v410
    %v412 = vpop.f32.mrb[0].mxu0
    %413 = vmatprep.mubr.f32.mxu0 0.0
    %414 = vmatmul.mubr.f32.gmra.mrb[0].mxu0 %v245
    %v415 = vpop.f32.mrb[0].mxu0
    %v416 = vadd.f32 %v230, %v415
    %v417 = vpop.f32.mrb[0].mxu0
    %418 = vmatprep.mubr.f32.mxu0 0.0
    %419 = vmatmul.mubr.f32.gmra.mrb[0].mxu0 %v248
    %v420 = vpop.f32.mrb[0].mxu0
    %v421 = vadd.f32 %v235, %v420
    %v422 = vpop.f32.mrb[0].mxu0
    %423 = vdwg.mxu0
    %v424 = vtanh.pop %v317
    %v425 = vtanh.pop %v319
    %v426 = vtanh.pop %v406
    %v427 = vtanh.pop %v323
    %v428 = vtanh.pop %v325
    %v429 = vtanh.pop %v411
    %v430 = vtanh.pop %v329
    %v431 = vtanh.pop %v331
    %v432 = vtanh.pop %v416
    %v433 = vtanh.pop %v335
    %v434 = vtanh.pop %v337
    %v435 = vtanh.pop %v421
    %v436 = vld [vmem:[%s5] sm:$0x1]
    %v437 = vld [vmem:[#allocation2] sm:$0x1]
    %439 = vset.pattern.permute.xlu0 0
    %440 = vperm.xlu0 %439, %v437
    %v441 = vpop.permute.xlu0 %440
    %v443 = vlaneseq
    %v444 = vshrl.u32 %v443, 7
    %v445 = vsub.s32 0, %v444
    %v446 = vrot.slane %v441, %v445
    %v448 = vsel %vm237, %v436, 0
    %450 = vmatprep.subr.mxu0 %v425
    %451 = vmatpush1.msra.mxu0 %v424
    %452 = vmatprep.subr.mxu0 %v428
    %453 = vmatpush1.msra.mxu0 %v427
    %454 = vmatprep.subr.mxu0 %v431
    %455 = vmatpush1.msra.mxu0 %v430
    %456 = vmatprep.subr.mxu0 %v434
    %457 = vmatpush1.msra.mxu0 %v433
    %458 = vmatprep.subr.mxu0 0.0
    %459 = vmatpush1.msra.mxu0 0.0
    %460 = vmatprep.subr.mxu0 0.0
    %461 = vmatpush1.msra.mxu0 0.0
    %462 = vmatprep.subr.mxu0 0.0
    %463 = vmatpush1.msra.mxu0 0.0
    %464 = vmatprep.subr.mxu0 0.0
    %465 = vmatpush1.msra.mxu0 0.0
    %466 = vmatprep.subr.mxu0 0.0
    %467 = vmatpush1.msra.mxu0 0.0
    %468 = vmatprep.subr.mxu0 0.0
    %469 = vmatpush1.msra.mxu0 0.0
    %470 = vmatprep.subr.mxu0 0.0
    %471 = vmatpush1.msra.mxu0 0.0
    %472 = vmatprep.subr.mxu0 0.0
    %473 = vmatpush1.msra.mxu0 0.0
    %474 = vmatprep.subr.mxu0 0.0
    %475 = vmatpush1.msra.mxu0 0.0
    %476 = vmatprep.subr.mxu0 0.0
    %477 = vmatpush1.msra.mxu0 0.0
    %478 = vmatprep.subr.mxu0 0.0
    %479 = vmatpush1.msra.mxu0 0.0
    %480 = vmatprep.subr.mxu0 0.0
    %481 = vmatpush1.msra.mxu0 0.0
    %482 = vmatprep.subr.mxu0 0.0
    %483 = vmatpush1.msra.mxu0 0.0
    %484 = vmatprep.subr.mxu0 0.0
    %485 = vmatpush1.msra.mxu0 0.0
    %486 = vmatprep.subr.mxu0 0.0
    %487 = vmatpush1.msra.mxu0 0.0
    %488 = vmatprep.subr.mxu0 0.0
    %489 = vmatpush1.msra.mxu0 0.0
    %490 = vmatprep.subr.mxu0 0.0
    %491 = vmatpush1.msra.mxu0 0.0
    %492 = vmatprep.subr.mxu0 0.0
    %493 = vmatpush1.msra.mxu0 0.0
    %494 = vmatprep.subr.mxu0 0.0
    %495 = vmatpush1.msra.mxu0 0.0
    %496 = vmatprep.subr.mxu0 0.0
    %497 = vmatpush1.msra.mxu0 0.0
    %498 = vmatprep.subr.mxu0 0.0
    %499 = vmatpush1.msra.mxu0 0.0
    %500 = vmatprep.subr.mxu0 0.0
    %501 = vmatpush1.msra.mxu0 0.0
    %502 = vmatprep.subr.mxu0 0.0
    %503 = vmatpush1.msra.mxu0 0.0
    %504 = vmatprep.subr.mxu0 0.0
    %505 = vmatpush1.msra.mxu0 0.0
    %506 = vmatprep.subr.mxu0 0.0
    %507 = vmatpush1.msra.mxu0 0.0
    %508 = vmatprep.subr.mxu0 0.0
    %509 = vmatpush1.msra.mxu0 0.0
    %510 = vmatprep.subr.mxu0 0.0
    %511 = vmatpush1.msra.mxu0 0.0
    %512 = vmatprep.subr.mxu0 0.0
    %513 = vmatpush1.msra.mxu0 0.0
    %514 = vmatprep.mubr.f32.mxu0 0.0
    %515 = vmatmul.mubr.f32.gmra.mrb[0].mxu0 %v448
    %v516 = vpop.f32.mrb[0].mxu0
    %v517 = vadd.f32 %v446, %v516
    %v518 = vpop.f32.mrb[0].mxu0
    %v519 = vadd.f32 %v446, %v518
    %520 = vdwg.mxu0
    %521 = vmatprep.subr.mxu0 0.0
    %522 = vmatpush1.msra.mxu0 %v426
    %523 = vmatprep.subr.mxu0 0.0
    %524 = vmatpush1.msra.mxu0 %v429
    %525 = vmatprep.subr.mxu0 0.0
    %526 = vmatpush1.msra.mxu0 %v432
    %527 = vmatprep.subr.mxu0 0.0
    %528 = vmatpush1.msra.mxu0 %v435
    %529 = vmatprep.subr.mxu0 0.0
    %530 = vmatpush1.msra.mxu0 0.0
    %531 = vmatprep.subr.mxu0 0.0
    %532 = vmatpush1.msra.mxu0 0.0
    %533 = vmatprep.subr.mxu0 0.0
    %534 = vmatpush1.msra.mxu0 0.0
    %535 = vmatprep.subr.mxu0 0.0
    %536 = vmatpush1.msra.mxu0 0.0
    %537 = vmatprep.subr.mxu0 0.0
    %538 = vmatpush1.msra.mxu0 0.0
    %539 = vmatprep.subr.mxu0 0.0
    %540 = vmatpush1.msra.mxu0 0.0
    %541 = vmatprep.subr.mxu0 0.0
    %542 = vmatpush1.msra.mxu0 0.0
    %543 = vmatprep.subr.mxu0 0.0
    %544 = vmatpush1.msra.mxu0 0.0
    %545 = vmatprep.subr.mxu0 0.0
    %546 = vmatpush1.msra.mxu0 0.0
    %547 = vmatprep.subr.mxu0 0.0
    %548 = vmatpush1.msra.mxu0 0.0
    %549 = vmatprep.subr.mxu0 0.0
    %550 = vmatpush1.msra.mxu0 0.0
    %551 = vmatprep.subr.mxu0 0.0
    %552 = vmatpush1.msra.mxu0 0.0
    %553 = vmatprep.subr.mxu0 0.0
    %554 = vmatpush1.msra.mxu0 0.0
    %555 = vmatprep.subr.mxu0 0.0
    %556 = vmatpush1.msra.mxu0 0.0
    %557 = vmatprep.subr.mxu0 0.0
    %558 = vmatpush1.msra.mxu0 0.0
    %559 = vmatprep.subr.mxu0 0.0
    %560 = vmatpush1.msra.mxu0 0.0
    %561 = vmatprep.subr.mxu0 0.0
    %562 = vmatpush1.msra.mxu0 0.0
    %563 = vmatprep.subr.mxu0 0.0
    %564 = vmatpush1.msra.mxu0 0.0
    %565 = vmatprep.subr.mxu0 0.0
    %566 = vmatpush1.msra.mxu0 0.0
    %567 = vmatprep.subr.mxu0 0.0
    %568 = vmatpush1.msra.mxu0 0.0
    %569 = vmatprep.subr.mxu0 0.0
    %570 = vmatpush1.msra.mxu0 0.0
    %571 = vmatprep.subr.mxu0 0.0
    %572 = vmatpush1.msra.mxu0 0.0
    %573 = vmatprep.subr.mxu0 0.0
    %574 = vmatpush1.msra.mxu0 0.0
    %575 = vmatprep.subr.mxu0 0.0
    %576 = vmatpush1.msra.mxu0 0.0
    %577 = vmatprep.subr.mxu0 0.0
    %578 = vmatpush1.msra.mxu0 0.0
    %579 = vmatprep.subr.mxu0 0.0
    %580 = vmatpush1.msra.mxu0 0.0
    %581 = vmatprep.subr.mxu0 0.0
    %582 = vmatpush1.msra.mxu0 0.0
    %583 = vmatprep.subr.mxu0 0.0
    %584 = vmatpush1.msra.mxu0 0.0
    %585 = vmatprep.mubr.f32.mxu0 0.0
    %586 = vmatmul.mubr.f32.gmra.mrb[0].mxu0 %v448
    %v587 = vpop.f32.mrb[0].mxu0
    %v588 = vadd.f32 %v446, %v587
    %v589 = vpop.f32.mrb[0].mxu0
    %590 = vdwg.mxu0
    %v591 = vmax.f32 %v517, 0.0
    %v592 = vmax.f32 %v519, 0.0
    %v593 = vmax.f32 %v588, 0.0
    %v594 = vand.u32 2147483647, %v517
    %v595 = vand.u32 2147483647, %v519
    %v596 = vand.u32 2147483647, %v588
    %v597 = vsub.f32 0.0, %v594
    %v598 = vsub.f32 0.0, %v595
    %v599 = vsub.f32 0.0, %v596
    %v600 = vmul.f32 %v597, 1.442695
    %v601 = vpow.pop %v600
    %v602 = vmul.f32 %v598, 1.442695
    %v603 = vpow.pop %v602
    %v604 = vmul.f32 %v599, 1.442695
    %v605 = vpow.pop %v604
    %v606 = vadd.f32 %v601, 1.0
    %v607 = vlog2.pop %v606
    %v608 = vmul.f32 %v607, 0.6931472
    %v609 = vmul.f32 -0.5, %v601
    %v610 = vadd.f32 %v609, 1.0
    %v611 = vmul.f32 %v610, %v601
    %v612 = vand.u32 2147483647, %v601
    %vm613 = vcmp.lt.f32.partialorder %v612, 0.0004427343
    %v614 = vsel %vm613, %v611, %v608
    %v615 = vadd.f32 %v603, 1.0
    %v616 = vlog2.pop %v615
    %v617 = vmul.f32 %v616, 0.6931472
    %v618 = vmul.f32 -0.5, %v603
    %v619 = vadd.f32 %v618, 1.0
    %v620 = vmul.f32 %v619, %v603
    %v621 = vand.u32 2147483647, %v603
    %vm622 = vcmp.lt.f32.partialorder %v621, 0.0004427343
    %v623 = vsel %vm622, %v620, %v617
    %v624 = vadd.f32 %v605, 1.0
    %v625 = vlog2.pop %v624
    %v626 = vmul.f32 %v625, 0.6931472
    %v627 = vmul.f32 -0.5, %v605
    %v628 = vadd.f32 %v627, 1.0
    %v629 = vmul.f32 %v628, %v605
    %v630 = vand.u32 2147483647, %v605
    %vm631 = vcmp.lt.f32.partialorder %v630, 0.0004427343
    %v632 = vsel %vm631, %v629, %v626
    %v633 = vadd.f32 %v591, %v614
    %v634 = vadd.f32 %v592, %v623
    %v635 = vadd.f32 %v593, %v632
    %v636 = vadd.f32 %v633, 0.001
    %v637 = vadd.f32 %v634, 0.001
    %v638 = vadd.f32 %v635, 0.001
    %v642 = vcombine.low %v636, %v637
    %v644 = vunpack.c.l.s4 1966171168
    %v645 = vunpack.c.0.s8 %v644
    %v646 = vlaneseq
    %v647 = vshrl.u32 %v646, 7
    %v648 = vsub.s32 %v645, %v647
    %v649 = vrot.slane %v642, %v648
    %v651 = vunpack.c.l.s4 1966171168
    %v652 = vunpack.c.0.s8 %v651
    %v653 = vlaneseq
    %v654 = vshrl.u32 %v653, 7
    %v655 = vsub.s32 %v652, %v654
    %v656 = vrot.slane %v638, %v655
    %v657 = vcombine.low %v649, %v656
    %v659 = vunpack.c.l.s4 1966171168
    %v660 = vunpack.c.0.s8 %v659
    %v661 = vlaneseq
    %v662 = vshrl.u32 %v661, 7
    %v663 = vsub.s32 %v660, %v662
    %v664 = vrot.slane %v657, %v663
    %v666 = vlaneseq
    %vm667 = vcmp.ge.s32.totalorder %v666, 0
    %vm668 = vcmp.lt.s32.totalorder %v666, 384
    %vm669 = vmand %vm667, %vm668
    %670 = vst.msk [vmem:[#allocation3] sm:$0x7] %vm669, %v664
    // Predicated region
    $region30: #{tpu_custom_call.1} parent=1 // pred_check
      _
    $region31: #{tpu_custom_call.1} parent=1 // pred_check_branch
      %672 = sbr.rel (0) target = $region33
    $region32: #{tpu_custom_call.1} parent=1 // pred_region
      %s674 = ssub.s32 48, 48
      %675 = vsyncadd [#allocation4], %s674
      %s677 = sshll.u32 [#allocation3], 4
      %s678 = int_to_ptr.vmem [resolvable:$true] %s677
      %680 = dma.vmem_to_hbm [thread:$0]  %s678, 48, %s7, [#allocation4]
    $region33: #{tpu_custom_call.1} parent=1 // pred_fallthru
      _
    // Predicated region
    $region34: #{tpu_custom_call.1} parent=1 // pred_check
      _
    $region35: #{tpu_custom_call.1} parent=1 // pred_check_branch
      %682 = sbr.rel (0) target = $region37
    $region36: #{tpu_custom_call.1} parent=1 // pred_region
      %683 = dma.done [#allocation4], 48
    $region37: #{tpu_custom_call.1} parent=1 // pred_fallthru
      _
    %684 = vsyncpa [#allocation4], 1

</llo_original>
